<compile_context>
chip_gen: v7x
topology: tpu7x:2x2x1
jax: 0.10.0
libtpu: 0.0.40
codegen_flags: <defaults>
</compile_context>

<pallas_src>
import functools

import jax
import jax.numpy as jnp
from jax.experimental import pallas as pl
from jax.experimental.pallas import tpu as pltpu  # noqa: F401 (TPU backend assumed)

# Shapes consistent with the module (BATCH_SIZE / EMBEDDING_SIZE / OUTPUT_SIZE are the
# module's globals; vocab and sequence length kept small).
BATCH_SIZE = 128
EMBEDDING_SIZE = 50
OUTPUT_SIZE = 2
VOCAB_SIZE = 16
SEQ_LEN = 6


def basenet_kernel(packed_ref, o_ref, *, seq_len, inv_len):
    """Pool positional embeddings, apply linear + ReLU, broadcast over batch.

    packed_ref: (S + OUT, E + 1) f32, single DMA:
        rows [0, S)      cols [0, E)  : embeddings[0:S]
        row  0           col  E       : float(batch)   (-> 1.0 after * inv_len)
        rows [S, S+OUT)  cols [0, E)  : linear weight, natural (OUT, E) orientation
        rows [S, S+OUT)  col  E       : linear bias
    o_ref: (OUT, B) f32 -- lane-dense output, transposed back in the wrapper.
    """
    data = packed_ref[...]                                                 # (S+OUT, E+1)

    # Pooled (augmented) vector; identical for every batch row. Last entry becomes 1.0,
    # which folds the bias into the reduce below.
    pooled_aug = jnp.sum(data[:seq_len, :], axis=0, keepdims=True) * inv_len   # (1, E+1)

    # Weight rows augmented with the bias column.
    w_aug = data[seq_len:, :]                                              # (OUT, E+1)

    # logits[j] = sum_e pooled[e] * W[j, e] + bias[j]
    # VPU broadcast-multiply + XLU lane reduce; no MXU involvement.
    logits = jnp.sum(w_aug * pooled_aug, axis=-1, keepdims=True)           # (OUT, 1)
    act = jnp.maximum(logits, 0.0)                                         # ReLU

    o_ref[...] = jnp.broadcast_to(act, o_ref.shape).astype(o_ref.dtype)


def basenet_embedding_forward(t_tokens, embeddings, weight, bias):
    """t_tokens: (B, S) int32 token ids (only the *shape* matters, as in the PyTorch code)."""
    batch, seq_len = t_tokens.shape
    emb_dim = embeddings.shape[1]
    out_dim = weight.shape[0]

    # TODO(synk): faithful to the PyTorch bug — token ids are ignored; embeddings are
    # indexed by position 0..seq_len-1 and the sum is divided by the batch size.
    emb_slice = embeddings[:seq_len].astype(jnp.float32)                   # (S, E)

    # Pack everything into ONE f32 slab => one input DMA instead of three.
    packed = jnp.zeros((seq_len + out_dim, emb_dim + 1), dtype=jnp.float32)
    packed = packed.at[:seq_len, :emb_dim].set(emb_slice)
    packed = packed.at[0, emb_dim].set(float(batch))      # sum * inv_len == 1.0 exactly
    packed = packed.at[seq_len:, :emb_dim].set(weight.astype(jnp.float32))
    packed = packed.at[seq_len:, emb_dim].set(bias.astype(jnp.float32))

    kernel = functools.partial(basenet_kernel, seq_len=seq_len, inv_len=1.0 / batch)

    out_t = pl.pallas_call(
        kernel,
        out_shape=jax.ShapeDtypeStruct((out_dim, batch), jnp.float32),     # lane-dense
        grid=(1,),
        in_specs=[
            pl.BlockSpec((seq_len + out_dim, emb_dim + 1), lambda i: (0, 0)),
        ],
        out_specs=pl.BlockSpec((out_dim, batch), lambda i: (0, 0)),
    )(packed)

    return out_t.T                                                         # (B, OUT)


def _reference(t_tokens, embeddings, weight, bias):
    """Pure-JAX mirror of the PyTorch forward, for a correctness check."""
    batch, seq_len = t_tokens.shape
    pooled = jnp.sum(embeddings[:seq_len], axis=0) / batch                 # (E,)
    res = jnp.broadcast_to(pooled, (batch, embeddings.shape[1]))           # (B, E)
    out = res @ weight.T + bias
    return jnp.maximum(out, 0.0)


if __name__ == "__main__":
    key = jax.random.PRNGKey(0)
    k_emb, k_w, k_b, k_t = jax.random.split(key, 4)

    # Deterministic "pretrained" embedding table (the module uses a global `embeddings`).
    embeddings = jax.random.normal(k_emb, (VOCAB_SIZE, EMBEDDING_SIZE), dtype=jnp.float32)

    # Linear params: xavier_uniform_ for weight (as in __init__), default PyTorch bias init.
    fan_in, fan_out = EMBEDDING_SIZE, OUTPUT_SIZE
    xav = (6.0 / (fan_in + fan_out)) ** 0.5
    weight = jax.random.uniform(k_w, (OUTPUT_SIZE, EMBEDDING_SIZE),
                                minval=-xav, maxval=xav, dtype=jnp.float32)
    b_bound = 1.0 / (fan_in ** 0.5)
    bias = jax.random.uniform(k_b, (OUTPUT_SIZE,),
                              minval=-b_bound, maxval=b_bound, dtype=jnp.float32)

    # Token-id input; only its shape is actually consumed (faithful to the PyTorch code).
    t_tokens = jax.random.randint(k_t, (BATCH_SIZE, SEQ_LEN), 0, VOCAB_SIZE, dtype=jnp.int32)

    out = basenet_embedding_forward(t_tokens, embeddings, weight, bias)
    out = jax.block_until_ready(out)

    ref = _reference(t_tokens, embeddings, weight, bias)
    assert out.shape == (BATCH_SIZE, OUTPUT_SIZE)
    assert jnp.allclose(out, ref, atol=1e-5, rtol=1e-5), "mismatch vs reference"

    print("KERNEL_OK")
</pallas_src>

<mosaic_0001>
module attributes {stable_mosaic.version = 11 : i64} {
  func.func @basenet_kernel(%arg0: i32, %arg1: memref<8x51xf32, #tpu.memory_space<vmem>>, %arg2: memref<2x128xf32, #tpu.memory_space<vmem>>) attributes {dimension_semantics = [#tpu.dimension_semantics<arbitrary>], iteration_bounds = array<i64: 1>, scalar_prefetch = 0 : i64, scratch_operands = 0 : i64, tpu.core_type = #tpu.core_type<tc>, window_params = [{pipeline_mode = #tpu.pipeline_mode<synchronous>, transform_indices = @transform_0, window_bounds = array<i64: 8, 51>}, {pipeline_mode = #tpu.pipeline_mode<synchronous>, transform_indices = @transform_1, window_bounds = array<i64: 2, 128>}]} {
    %c0 = arith.constant 0 : index
    %c0_0 = arith.constant 0 : index
    %0 = vector.load %arg1[%c0, %c0_0] : memref<8x51xf32, #tpu.memory_space<vmem>>, vector<8x51xf32>
    %1 = vector.extract_strided_slice %0 {offsets = [0, 0], sizes = [6, 51], strides = [1, 1]} : vector<8x51xf32> to vector<6x51xf32>
    %cst = arith.constant dense<0.000000e+00> : vector<51xf32>
    %2 = vector.multi_reduction <add>, %1, %cst [0] : vector<6x51xf32> to vector<51xf32>
    %3 = vector.shape_cast %2 : vector<51xf32> to vector<1x51xf32>
    %cst_1 = arith.constant 7.812500e-03 : f32
    %4 = vector.broadcast %cst_1 : f32 to vector<1x51xf32>
    %5 = arith.mulf %3, %4 : vector<1x51xf32>
    %6 = vector.extract_strided_slice %0 {offsets = [6, 0], sizes = [2, 51], strides = [1, 1]} : vector<8x51xf32> to vector<2x51xf32>
    %7 = vector.broadcast %5 : vector<1x51xf32> to vector<2x51xf32>
    %8 = arith.mulf %6, %7 : vector<2x51xf32>
    %cst_2 = arith.constant dense<0.000000e+00> : vector<2xf32>
    %9 = vector.multi_reduction <add>, %8, %cst_2 [1] : vector<2x51xf32> to vector<2xf32>
    %10 = vector.shape_cast %9 : vector<2xf32> to vector<2x1xf32>
    %cst_3 = arith.constant 0.000000e+00 : f32
    %11 = vector.broadcast %cst_3 : f32 to vector<2x1xf32>
    %12 = arith.maximumf %10, %11 : vector<2x1xf32>
    %13 = vector.shape_cast %12 : vector<2x1xf32> to vector<2x1xf32>
    %14 = vector.broadcast %13 : vector<2x1xf32> to vector<2x128xf32>
    %c0_4 = arith.constant 0 : index
    %c0_5 = arith.constant 0 : index
    %15 = vector.load %arg2[%c0_4, %c0_5] : memref<2x128xf32, #tpu.memory_space<vmem>>, vector<2x128xf32>
    tpu.vector_store %arg2[%c0_4, %c0_5], %14 {strides = array<i32>} : memref<2x128xf32, #tpu.memory_space<vmem>>, vector<2x128xf32>,
    return
  }
  func.func @transform_0(%arg0: i32) -> (i32, i32) {
    %c0_i32 = arith.constant 0 : i32
    %c0_i32_0 = arith.constant 0 : i32
    %c0_i32_1 = arith.constant 0 : i32
    return %c0_i32, %c0_i32_0 : i32, i32
  }
  func.func @transform_1(%arg0: i32) -> (i32, i32) {
    %c0_i32 = arith.constant 0 : i32
    %c0_i32_0 = arith.constant 0 : i32
    %c0_i32_1 = arith.constant 0 : i32
    return %c0_i32, %c0_i32_0 : i32, i32
  }
}

</mosaic_0001>

<llo_original>
// kernel: tpu_custom_call.1
$region0: #{tpu_custom_call.1}
  #allocation0 [shape = 'u32[]', space=smem, size = 0x4, offset = 0x4, fixed_abs, tag = 'smem constant byte address 0x4 - core index']
  #allocation1 [shape = 'u32[144,128]{1,0:T(1,128)}', space=vmem, size = 0x12000, scoped, tag = 'internal scratch']
  %s0 = inlined_call_operand.hbm [shape: f32[8,51], index: 0, kind: input, shape index: {}]
  %s1 = inlined_call_operand.hbm [shape: f32[2,128], index: 1, kind: output, shape index: {}]
  %s2 = sld [smem:[#allocation0]]
  $region18: #{tpu_custom_call.1} parent=0
    _
  %s4 = ssub.s32 1, %s2
  %s5 = scalar_select 0, %s4, %s2
  $region1: #{tpu_custom_call.1} parent=0
    #allocation2 [shape = 'u8[4096]{0}', space=vmem, size = 0x1000, scoped, tag = 'input window, operand 0, single buffered']
    #allocation3 [shape = 's32[1]{0}', space=sflag, size = 0x4, scoped, tag = 'scoped memory for tpu_custom_call.1']
    #allocation4 [shape = 's32[1]{0}', space=sflag, size = 0x4, scoped, tag = 'scoped memory for tpu_custom_call.1']
    #allocation5 [shape = 'u8[1024]{0}', space=vmem, size = 0x400, scoped, tag = 'output window, operand 0, single buffered']
    %6 = vsyncpa [#allocation3], 0
    %7 = vsyncpa [#allocation4], 0
    // Predicated region
    $region2: #{tpu_custom_call.1} parent=1 // pred_check
      _
    $region3: #{tpu_custom_call.1} parent=1 // pred_check_branch
      %9 = sbr.rel (0) target = $region5
    $region4: #{tpu_custom_call.1} parent=1 // pred_region
      %s11 = ssub.s32 128, 128
      %12 = vsyncadd [#allocation3], %s11
      %s14 = sshll.u32 [#allocation2], 4
      %s15 = int_to_ptr.vmem [resolvable:$true] %s14
      %17 = dma.hbm_to_vmem [thread:$0]  %s0, 128, %s15, [#allocation3]
    $region5: #{tpu_custom_call.1} parent=1 // pred_fallthru
      _
    // Predicated region
    $region6: #{tpu_custom_call.1} parent=1 // pred_check
      _
    $region7: #{tpu_custom_call.1} parent=1 // pred_check_branch
      %19 = sbr.rel (0) target = $region9
    $region8: #{tpu_custom_call.1} parent=1 // pred_region
      %20 = dma.done [#allocation3], 128
    $region9: #{tpu_custom_call.1} parent=1 // pred_fallthru
      _
    %v21 = vld [vmem:[#allocation2] sm:$0xff]
    %vm22 = vcmask 414720
    %v23 = vsel %vm22, %v21, 0.0
    %v24 = vrot.slane %v23, 4
    %v25 = vadd.f32 %v23, %v24
    %v26 = vrot.slane %v25, 2
    %v27 = vadd.f32 %v25, %v26
    %v28 = vrot.slane %v27, 1
    %v29 = vadd.f32 %v27, %v28
    %v30 = vmul.f32 %v29, 0.0078125
    %v31 = vmul.f32 %v21, %v30
    %vm32 = vcmask 416774
    %v33 = vsel %vm32, %v31, 0.0
    %34 = vadd.xlane.f32.xlu0 %v33
    %v35 = vpop.xlane.xlu0 %34
    %v36 = vmax.f32 %v35, 0.0
    %37 = vst [vmem:[#allocation5 - $0x6] sm:$0xc0] %v36
    // Predicated region
    $region10: #{tpu_custom_call.1} parent=1 // pred_check
      _
    $region11: #{tpu_custom_call.1} parent=1 // pred_check_branch
      %39 = sbr.rel (0) target = $region13
    $region12: #{tpu_custom_call.1} parent=1 // pred_region
      %s41 = ssub.s32 32, 32
      %42 = vsyncadd [#allocation4], %s41
      %s44 = sshll.u32 [#allocation5], 4
      %s45 = int_to_ptr.vmem [resolvable:$true] %s44
      %47 = dma.vmem_to_hbm [thread:$0]  %s45, 32, %s1, [#allocation4]
    $region13: #{tpu_custom_call.1} parent=1 // pred_fallthru
      _
    // Predicated region
    $region14: #{tpu_custom_call.1} parent=1 // pred_check
      _
    $region15: #{tpu_custom_call.1} parent=1 // pred_check_branch
      %49 = sbr.rel (0) target = $region17
    $region16: #{tpu_custom_call.1} parent=1 // pred_region
      %50 = dma.done [#allocation4], 32
    $region17: #{tpu_custom_call.1} parent=1 // pred_fallthru
      _
    %51 = vsyncpa [#allocation3], 1
    %52 = vsyncpa [#allocation4], 1

</llo_original>
